<compile_context>
chip_gen: v7x
topology: tpu7x:2x2x1
jax: 0.10.0
libtpu: 0.0.40
codegen_flags: <defaults>
</compile_context>

<pallas_src>
import functools

import jax
import jax.numpy as jnp
from jax.experimental import pallas as pl
from jax.experimental.pallas import tpu as pltpu

DIM1 = 32          # hidden width of the layers used in forward()
BN_EPS = 1e-5
LEAKY_SLOPE = 0.01


def _disc_kernel(x_ref, w1_ref, s_ref, p_ref, o_ref):
    # Linear(input_length -> 32) on P packed samples at once:
    #   x_ref: (bm, P*L), w1_ref: (P*L, P*32) block-diagonal  ->  h: (bm, P*32)
    h = jnp.dot(x_ref[...], w1_ref[...], preferred_element_type=jnp.float32)
    h = h + p_ref[0:1, :]                              # bias b1 (tiled P times)
    h = jnp.where(h >= 0, h, LEAKY_SLOPE * h)          # leaky_relu

    # BatchNorm1d(32) is folded into w2' (wrapper-side); Dropout(0.95) is the
    # identity in eval mode. Linear(32 -> 1) for all P packed samples via one
    # block-diagonal matmul: s_ref: (P*32, P) -> out: (bm, P), lane-dense store.
    out = jnp.dot(h, s_ref[...], preferred_element_type=jnp.float32)
    o_ref[...] = (out + p_ref[1:2, 0:1]).astype(o_ref.dtype)


def _lane_pad(cols):
    """Columns after TPU lane padding (minor dim padded to a multiple of 128)."""
    return ((max(cols, 1) + 127) // 128) * 128


def _pick_pack_factor(n, feat):
    """Largest power-of-two P <= 8 with P*feat <= 128 lanes and P | n."""
    p = 8
    while p > 1 and (p * feat > 128 or n % p != 0):
        p //= 2
    return p


def _pick_block_rows(rows, packed_feat, packed_hidden, packed_out, x_itemsize,
                     *, target_x_bytes=2 << 20, vmem_budget=16 << 20, granule=8):
    """Packed rows per grid step, sized by lane-PADDED VMEM bytes per row."""
    per_row = (2 * _lane_pad(packed_feat) * x_itemsize      # x tile, double-buffered
               + 3 * _lane_pad(packed_hidden) * 4           # h + elementwise temps (f32)
               + 2 * _lane_pad(packed_out) * 4)             # out tile, double-buffered
    by_vmem = vmem_budget // per_row
    by_target = target_x_bytes // max(1, packed_feat * x_itemsize)
    bm = max(granule, min(by_vmem, by_target) // granule * granule)
    if rows > granule:                                       # >= 2 grid steps when
        half = (rows + 1) // 2                               # possible (v7x megacore)
        half = (half + granule - 1) // granule * granule
        bm = min(bm, half)
    return rows if rows <= bm else bm


@functools.partial(jax.jit, static_argnames=("block_rows",))
def discriminator_law_aw(x, params, *, block_rows=None):
    """x: (N, input_length). params: dict of arrays. Returns (N, 1) float32."""
    n, feat = x.shape
    p = _pick_pack_factor(n, feat)          # P=1 fallback keeps correctness for odd N / wide L
    rows = n // p
    packed_feat = p * feat
    packed_hidden = p * DIM1

    # ---- Fold eval-mode BatchNorm into the second Linear (exact algebra) ----
    scale = params["gamma"] * jax.lax.rsqrt(params["var"] + BN_EPS)     # (1, 32)
    shift = params["beta"] - params["mean"] * scale                     # (1, 32)
    w2_col = (params["w2"][:, 0] * scale[0])[:, None]                   # (32, 1)
    b2_f = (params["b2"] + shift @ params["w2"])[0, 0]                  # scalar

    # ---- Block-diagonal packing: P samples per row -> lane-dense matmuls ----
    eye = jnp.eye(p, dtype=jnp.float32)
    w1_blk = jnp.kron(eye, params["w1"].astype(jnp.float32)).astype(x.dtype)  # (P*L, P*32)
    s_blk = jnp.kron(eye, w2_col.astype(jnp.float32))                         # (P*32, P)
    packed_bias = jnp.concatenate(
        [jnp.tile(params["b1"].astype(jnp.float32), (1, p)),
         jnp.full((1, packed_hidden), b2_f, jnp.float32)], axis=0)            # (2, P*32)

    # Free row-major metadata reshape; no jnp.pad / no extra HBM pass over x.
    x_p = x.reshape(rows, packed_feat)

    if block_rows is not None:
        bm = min(int(block_rows), rows)
        if bm < rows:
            assert bm % 8 == 0, "block_rows must be a multiple of 8"
    else:
        bm = _pick_block_rows(rows, packed_feat, packed_hidden, p,
                              jnp.dtype(x.dtype).itemsize)

    grid = (pl.cdiv(rows, bm),)             # ragged last block handled by Pallas masking

    out = pl.pallas_call(
        _disc_kernel,
        out_shape=jax.ShapeDtypeStruct((rows, p), jnp.float32),
        grid=grid,
        in_specs=[
            pl.BlockSpec((bm, packed_feat), lambda i: (i, 0)),            # x: tiled over rows
            pl.BlockSpec((packed_feat, packed_hidden), lambda i: (0, 0)), # W1 blk-diag, resident
            pl.BlockSpec((packed_hidden, p), lambda i: (0, 0)),           # w2' blk-diag, resident
            pl.BlockSpec((2, packed_hidden), lambda i: (0, 0)),           # packed b1 / b2'
        ],
        out_specs=pl.BlockSpec((bm, p), lambda i: (i, 0)),
        compiler_params=pltpu.CompilerParams(
            dimension_semantics=("parallel",),      # megacore sharding on v7x
            vmem_limit_bytes=40 * 1024 * 1024,      # safe on v5e/v6e/v7x, ample headroom
        ),
    )(x_p, w1_blk, s_blk, packed_bias)

    return out.reshape(n, 1)


def init_params(key, input_length):
    """Parameter shapes of the module; non-trivial BN stats to exercise folding."""
    k1, k2, k3, k4, k5, k6, k7, k8 = jax.random.split(key, 8)
    bound1 = 1.0 / jnp.sqrt(input_length)
    bound2 = 1.0 / jnp.sqrt(DIM1)
    return {
        # Linear(input_length, 32): PyTorch weight is (32, L); stored as (L, 32)
        "w1": jax.random.uniform(k1, (input_length, DIM1), jnp.float32,
                                 -bound1, bound1),
        "b1": jax.random.uniform(k2, (1, DIM1), jnp.float32, -bound1, bound1),
        # BatchNorm1d(32) affine params + running stats (eval mode)
        "gamma": jax.random.uniform(k5, (1, DIM1), jnp.float32, 0.5, 1.5),
        "beta": 0.1 * jax.random.normal(k6, (1, DIM1), jnp.float32),
        "mean": 0.1 * jax.random.normal(k7, (1, DIM1), jnp.float32),
        "var": jax.random.uniform(k8, (1, DIM1), jnp.float32, 0.5, 1.5),
        # Linear(32, 1): PyTorch weight is (1, 32); stored as (32, 1)
        "w2": jax.random.uniform(k3, (DIM1, 1), jnp.float32, -bound2, bound2),
        "b2": jax.random.uniform(k4, (1, 1), jnp.float32, -bound2, bound2),
    }


def reference(x, p):
    """Unfused pure-JAX reference matching the PyTorch eval-mode forward."""
    h = x @ p["w1"] + p["b1"]
    h = jnp.where(h >= 0, h, LEAKY_SLOPE * h)
    h = (h - p["mean"]) * jax.lax.rsqrt(p["var"] + BN_EPS) * p["gamma"] + p["beta"]
    return h @ p["w2"] + p["b2"]


if __name__ == "__main__":
    key = jax.random.PRNGKey(0)
    kx, kx2, kx3, kp = jax.random.split(key, 4)

    input_length = 16
    params = init_params(kp, input_length)

    # --- small batch: P=8 packing, single grid step ------------------------
    x = jax.random.normal(kx, (8, input_length), jnp.float32)
    out = jax.block_until_ready(discriminator_law_aw(x, params))
    ref = reference(x, params)
    assert out.shape == (8, 1), out.shape
    assert jnp.allclose(out, ref, atol=1e-4, rtol=1e-4)

    # --- multi-step grid with a ragged last block (600 -> 75 packed rows) --
    x2 = jax.random.normal(kx2, (600, input_length), jnp.float32)
    out2 = jax.block_until_ready(discriminator_law_aw(x2, params))
    assert out2.shape == (600, 1), out2.shape
    assert jnp.allclose(out2, reference(x2, params), atol=1e-4, rtol=1e-4)

    # --- odd batch: pack-factor fallback (P=1) + edge-block masking --------
    x3 = jax.random.normal(kx3, (13, input_length), jnp.float32)
    out3 = jax.block_until_ready(discriminator_law_aw(x3, params))
    assert out3.shape == (13, 1), out3.shape
    assert jnp.allclose(out3, reference(x3, params), atol=1e-4, rtol=1e-4)

    # --- bf16-at-the-source input (no wrapper cast; f32 accumulation) ------
    out_bf16 = jax.block_until_ready(
        discriminator_law_aw(x.astype(jnp.bfloat16), params))
    assert jnp.allclose(out_bf16, ref, atol=5e-2, rtol=5e-2)

    print("KERNEL_OK")
</pallas_src>

<mosaic_0001>
module attributes {stable_mosaic.version = 11 : i64} {
  func.func @_disc_kernel(%arg0: i32, %arg1: memref<1x128xf32, #tpu.memory_space<vmem>>, %arg2: memref<128x256xf32, #tpu.memory_space<vmem>>, %arg3: memref<256x8xf32, #tpu.memory_space<vmem>>, %arg4: memref<2x256xf32, #tpu.memory_space<vmem>>, %arg5: memref<1x8xf32, #tpu.memory_space<vmem>>) attributes {dimension_semantics = [#tpu.dimension_semantics<parallel>], iteration_bounds = array<i64: 1>, scalar_prefetch = 0 : i64, scratch_operands = 0 : i64, tpu.core_type = #tpu.core_type<tc>, window_params = [{transform_indices = @transform_0, window_bounds = array<i64: 1, 128>}, {pipeline_mode = #tpu.pipeline_mode<synchronous>, transform_indices = @transform_1, window_bounds = array<i64: 128, 256>}, {pipeline_mode = #tpu.pipeline_mode<synchronous>, transform_indices = @transform_2, window_bounds = array<i64: 256, 8>}, {pipeline_mode = #tpu.pipeline_mode<synchronous>, transform_indices = @transform_3, window_bounds = array<i64: 2, 256>}, {transform_indices = @transform_4, window_bounds = array<i64: 1, 8>}]} {
    %c0 = arith.constant 0 : index
    %c0_0 = arith.constant 0 : index
    %0 = vector.load %arg1[%c0, %c0_0] : memref<1x128xf32, #tpu.memory_space<vmem>>, vector<1x128xf32>
    %c0_1 = arith.constant 0 : index
    %c0_2 = arith.constant 0 : index
    %1 = vector.load %arg2[%c0_1, %c0_2] : memref<128x256xf32, #tpu.memory_space<vmem>>, vector<128x256xf32>
    %cst = arith.constant dense<0.000000e+00> : vector<1x256xf32>
    %2 = tpu.matmul %0, %1, %cst {dimension_numbers = #tpu.dot_dimension_numbers<[1], [0], [0], [1], [0, 0, 1, 1], [], []>} : vector<1x128xf32>, vector<128x256xf32>, vector<1x256xf32> -> vector<1x256xf32>
    %c0_3 = arith.constant 0 : index
    %c0_4 = arith.constant 0 : index
    %3 = vector.load %arg4[%c0_3, %c0_4] : memref<2x256xf32, #tpu.memory_space<vmem>>, vector<1x256xf32>
    %4 = arith.addf %2, %3 : vector<1x256xf32>
    %cst_5 = arith.constant 0.000000e+00 : f32
    %5 = vector.broadcast %cst_5 : f32 to vector<1x256xf32>
    %6 = arith.cmpf oge, %4, %5 : vector<1x256xf32>
    %cst_6 = arith.constant 0.00999999977 : f32
    %7 = vector.broadcast %cst_6 : f32 to vector<1x256xf32>
    %8 = arith.mulf %7, %4 : vector<1x256xf32>
    %9 = arith.select %6, %4, %8 : vector<1x256xi1>, vector<1x256xf32>
    %c0_7 = arith.constant 0 : index
    %c0_8 = arith.constant 0 : index
    %10 = vector.load %arg3[%c0_7, %c0_8] : memref<256x8xf32, #tpu.memory_space<vmem>>, vector<256x8xf32>
    %cst_9 = arith.constant dense<0.000000e+00> : vector<1x8xf32>
    %11 = tpu.matmul %9, %10, %cst_9 {dimension_numbers = #tpu.dot_dimension_numbers<[1], [0], [0], [1], [0, 0, 1, 1], [], []>} : vector<1x256xf32>, vector<256x8xf32>, vector<1x8xf32> -> vector<1x8xf32>
    %c1 = arith.constant 1 : index
    %c0_10 = arith.constant 0 : index
    %12 = vector.load %arg4[%c1, %c0_10] : memref<2x256xf32, #tpu.memory_space<vmem>>, vector<1x1xf32>
    %13 = vector.broadcast %12 : vector<1x1xf32> to vector<1x8xf32>
    %14 = arith.addf %11, %13 : vector<1x8xf32>
    %c0_11 = arith.constant 0 : index
    %c0_12 = arith.constant 0 : index
    %15 = vector.load %arg5[%c0_11, %c0_12] : memref<1x8xf32, #tpu.memory_space<vmem>>, vector<1x8xf32>
    tpu.vector_store %arg5[%c0_11, %c0_12], %14 {strides = array<i32>} : memref<1x8xf32, #tpu.memory_space<vmem>>, vector<1x8xf32>,
    return
  }
  func.func @transform_0(%arg0: i32) -> (i32, i32) {
    %c0_i32 = arith.constant 0 : i32
    %c0_i32_0 = arith.constant 0 : i32
    return %arg0, %c0_i32 : i32, i32
  }
  func.func @transform_1(%arg0: i32) -> (i32, i32) {
    %c0_i32 = arith.constant 0 : i32
    %c0_i32_0 = arith.constant 0 : i32
    %c0_i32_1 = arith.constant 0 : i32
    return %c0_i32, %c0_i32_0 : i32, i32
  }
  func.func @transform_2(%arg0: i32) -> (i32, i32) {
    %c0_i32 = arith.constant 0 : i32
    %c0_i32_0 = arith.constant 0 : i32
    %c0_i32_1 = arith.constant 0 : i32
    return %c0_i32, %c0_i32_0 : i32, i32
  }
  func.func @transform_3(%arg0: i32) -> (i32, i32) {
    %c0_i32 = arith.constant 0 : i32
    %c0_i32_0 = arith.constant 0 : i32
    %c0_i32_1 = arith.constant 0 : i32
    return %c0_i32, %c0_i32_0 : i32, i32
  }
  func.func @transform_4(%arg0: i32) -> (i32, i32) {
    %c0_i32 = arith.constant 0 : i32
    %c0_i32_0 = arith.constant 0 : i32
    return %arg0, %c0_i32 : i32, i32
  }
}

</mosaic_0001>

<llo_original>
// kernel: discriminator_law_aw.1
$region0: #{discriminator_law_aw.1}
  #allocation0 [shape = 'u32[]', space=smem, size = 0x4, offset = 0x4, fixed_abs, tag = 'smem constant byte address 0x4 - core index']
  #allocation1 [shape = 'u32[144,128]{1,0:T(1,128)}', space=vmem, size = 0x12000, scoped, tag = 'internal scratch']
  %s0 = inlined_call_operand.vmem [shape: f32[1,128], index: 0, kind: input, shape index: {}]
  %s1 = inlined_call_operand.vmem [shape: f32[128,256], index: 1, kind: input, shape index: {}]
  %s2 = inlined_call_operand.vmem [shape: f32[256,8], index: 2, kind: input, shape index: {}]
  %s3 = inlined_call_operand.vmem [shape: f32[2,256], index: 3, kind: input, shape index: {}]
  %s4 = inlined_call_operand.hbm [shape: f32[1,8], index: 4, kind: output, shape index: {}]
  %s5 = sld [smem:[#allocation0]]
  $region26: #{discriminator_law_aw.1} parent=0
    _
  %s7 = ssub.s32 1, %s5
  %s8 = scalar_select 0, %s7, %s5
  $region1: #{discriminator_law_aw.1} parent=0
    #allocation2 [shape = 'u8[512]{0}', space=vmem, size = 0x400, scoped, tag = 'output window, operand 0, single buffered']
    #allocation3 [shape = 's32[1]{0}', space=sflag, size = 0x4, scoped, tag = 'scoped memory for discriminator_law_aw.1']
    %9 = vsyncpa [#allocation3], 0
    // Predicated region
    $region2: #{discriminator_law_aw.1} parent=1 // pred_check
      _
    $region3: #{discriminator_law_aw.1} parent=1 // pred_check_branch
      %11 = sbr.rel (0) target = $region5
    $region4: #{discriminator_law_aw.1} parent=1 // pred_region
      _
    $region5: #{discriminator_law_aw.1} parent=1 // pred_fallthru
      _
    // Predicated region
    $region6: #{discriminator_law_aw.1} parent=1 // pred_check
      _
    $region7: #{discriminator_law_aw.1} parent=1 // pred_check_branch
      %13 = sbr.rel (0) target = $region9
    $region8: #{discriminator_law_aw.1} parent=1 // pred_region
      _
    $region9: #{discriminator_law_aw.1} parent=1 // pred_fallthru
      _
    // Predicated region
    $region10: #{discriminator_law_aw.1} parent=1 // pred_check
      _
    $region11: #{discriminator_law_aw.1} parent=1 // pred_check_branch
      %15 = sbr.rel (0) target = $region13
    $region12: #{discriminator_law_aw.1} parent=1 // pred_region
      _
    $region13: #{discriminator_law_aw.1} parent=1 // pred_fallthru
      _
    // Predicated region
    $region14: #{discriminator_law_aw.1} parent=1 // pred_check
      _
    $region15: #{discriminator_law_aw.1} parent=1 // pred_check_branch
      %17 = sbr.rel (0) target = $region17
    $region16: #{discriminator_law_aw.1} parent=1 // pred_region
      _
    $region17: #{discriminator_law_aw.1} parent=1 // pred_fallthru
      _
    %v18 = vld [vmem:[%s0] sm:$0x1]
    %v19 = vld [vmem:[%s1] sm:$0xff]
    %v20 = vld [vmem:[%s1 + $0x8] sm:$0xff]
    %v21 = vld [vmem:[%s1 + $0x10] sm:$0xff]
    %v22 = vld [vmem:[%s1 + $0x18] sm:$0xff]
    %v23 = vld [vmem:[%s1 + $0x20] sm:$0xff]
    %v24 = vld [vmem:[%s1 + $0x28] sm:$0xff]
    %v25 = vld [vmem:[%s1 + $0x30] sm:$0xff]
    %v26 = vld [vmem:[%s1 + $0x38] sm:$0xff]
    %v27 = vld [vmem:[%s1 + $0x40] sm:$0xff]
    %v28 = vld [vmem:[%s1 + $0x48] sm:$0xff]
    %v29 = vld [vmem:[%s1 + $0x50] sm:$0xff]
    %v30 = vld [vmem:[%s1 + $0x58] sm:$0xff]
    %v31 = vld [vmem:[%s1 + $0x60] sm:$0xff]
    %v32 = vld [vmem:[%s1 + $0x68] sm:$0xff]
    %v33 = vld [vmem:[%s1 + $0x70] sm:$0xff]
    %v34 = vld [vmem:[%s1 + $0x78] sm:$0xff]
    %v35 = vld [vmem:[%s1 + $0x80] sm:$0xff]
    %v36 = vld [vmem:[%s1 + $0x88] sm:$0xff]
    %v37 = vld [vmem:[%s1 + $0x90] sm:$0xff]
    %v38 = vld [vmem:[%s1 + $0x98] sm:$0xff]
    %v39 = vld [vmem:[%s1 + $0xa0] sm:$0xff]
    %v40 = vld [vmem:[%s1 + $0xa8] sm:$0xff]
    %v41 = vld [vmem:[%s1 + $0xb0] sm:$0xff]
    %v42 = vld [vmem:[%s1 + $0xb8] sm:$0xff]
    %v43 = vld [vmem:[%s1 + $0xc0] sm:$0xff]
    %v44 = vld [vmem:[%s1 + $0xc8] sm:$0xff]
    %v45 = vld [vmem:[%s1 + $0xd0] sm:$0xff]
    %v46 = vld [vmem:[%s1 + $0xd8] sm:$0xff]
    %v47 = vld [vmem:[%s1 + $0xe0] sm:$0xff]
    %v48 = vld [vmem:[%s1 + $0xe8] sm:$0xff]
    %v49 = vld [vmem:[%s1 + $0xf0] sm:$0xff]
    %v50 = vld [vmem:[%s1 + $0xf8] sm:$0xff]
    %v51 = vld [vmem:[%s3] ss:$2 sm:$0x3]
    %v53 = vlaneseq
    %v54 = vshrl.u32 %v53, 7
    %v55 = vsub.s32 0, %v54
    %v56 = vrot.slane %v51, %v55
    %v57 = vlaneseq
    %v58 = vshrl.u32 %v57, 7
    %v59 = vsub.s32 1, %v58
    %v60 = vrot.slane %v51, %v59
    %63 = vmatprep.subr.mxu0 %v20
    %64 = vmatpush1.msra.mxu0 %v19
    %65 = vmatprep.subr.mxu0 %v22
    %66 = vmatpush1.msra.mxu0 %v21
    %67 = vmatprep.subr.mxu0 %v24
    %68 = vmatpush1.msra.mxu0 %v23
    %69 = vmatprep.subr.mxu0 %v26
    %70 = vmatpush1.msra.mxu0 %v25
    %71 = vmatprep.subr.mxu0 %v28
    %72 = vmatpush1.msra.mxu0 %v27
    %73 = vmatprep.subr.mxu0 %v30
    %74 = vmatpush1.msra.mxu0 %v29
    %75 = vmatprep.subr.mxu0 %v32
    %76 = vmatpush1.msra.mxu0 %v31
    %77 = vmatprep.subr.mxu0 %v34
    %78 = vmatpush1.msra.mxu0 %v33
    %79 = vmatprep.subr.mxu0 %v36
    %80 = vmatpush1.msra.mxu0 %v35
    %81 = vmatprep.subr.mxu0 %v38
    %82 = vmatpush1.msra.mxu0 %v37
    %83 = vmatprep.subr.mxu0 %v40
    %84 = vmatpush1.msra.mxu0 %v39
    %85 = vmatprep.subr.mxu0 %v42
    %86 = vmatpush1.msra.mxu0 %v41
    %87 = vmatprep.subr.mxu0 %v44
    %88 = vmatpush1.msra.mxu0 %v43
    %89 = vmatprep.subr.mxu0 %v46
    %90 = vmatpush1.msra.mxu0 %v45
    %91 = vmatprep.subr.mxu0 %v48
    %92 = vmatpush1.msra.mxu0 %v47
    %93 = vmatprep.subr.mxu0 %v50
    %94 = vmatpush1.msra.mxu0 %v49
    %95 = vmatprep.subr.mxu0 0.0
    %96 = vmatpush1.msra.mxu0 0.0
    %97 = vmatprep.subr.mxu0 0.0
    %98 = vmatpush1.msra.mxu0 0.0
    %99 = vmatprep.subr.mxu0 0.0
    %100 = vmatpush1.msra.mxu0 0.0
    %101 = vmatprep.subr.mxu0 0.0
    %102 = vmatpush1.msra.mxu0 0.0
    %103 = vmatprep.subr.mxu0 0.0
    %104 = vmatpush1.msra.mxu0 0.0
    %105 = vmatprep.subr.mxu0 0.0
    %106 = vmatpush1.msra.mxu0 0.0
    %107 = vmatprep.subr.mxu0 0.0
    %108 = vmatpush1.msra.mxu0 0.0
    %109 = vmatprep.subr.mxu0 0.0
    %110 = vmatpush1.msra.mxu0 0.0
    %111 = vmatprep.subr.mxu0 0.0
    %112 = vmatpush1.msra.mxu0 0.0
    %113 = vmatprep.subr.mxu0 0.0
    %114 = vmatpush1.msra.mxu0 0.0
    %115 = vmatprep.subr.mxu0 0.0
    %116 = vmatpush1.msra.mxu0 0.0
    %117 = vmatprep.subr.mxu0 0.0
    %118 = vmatpush1.msra.mxu0 0.0
    %119 = vmatprep.subr.mxu0 0.0
    %120 = vmatpush1.msra.mxu0 0.0
    %121 = vmatprep.subr.mxu0 0.0
    %122 = vmatpush1.msra.mxu0 0.0
    %123 = vmatprep.subr.mxu0 0.0
    %124 = vmatpush1.msra.mxu0 0.0
    %125 = vmatprep.subr.mxu0 0.0
    %126 = vmatpush1.msra.mxu0 0.0
    %127 = vmatprep.mubr.f32.mxu0 0.0
    %128 = vmatmul.mubr.f32.gmra.mrb[0].mxu0 %v18
    %v129 = vpop.f32.mrb[0].mxu0
    %v130 = vadd.f32 %v56, %v129
    %v131 = vpop.f32.mrb[0].mxu0
    %v132 = vadd.f32 %v60, %v131
    %133 = vdwg.mxu0
    %vm134 = vcmp.ge.f32.partialorder %v130, 0.0
    %vm135 = vcmp.ge.f32.partialorder %v132, 0.0
    %v136 = vmul.f32 %v130, 0.01
    %v137 = vmul.f32 %v132, 0.01
    %v138 = vsel %vm134, %v130, %v136
    %v139 = vsel %vm135, %v132, %v137
    %v140 = vld [vmem:[%s2] sm:$0xff]
    %v141 = vld [vmem:[%s2 + $0x8] sm:$0xff]
    %v142 = vld [vmem:[%s2 + $0x10] sm:$0xff]
    %v143 = vld [vmem:[%s2 + $0x18] sm:$0xff]
    %v144 = vld [vmem:[%s2 + $0x20] sm:$0xff]
    %v145 = vld [vmem:[%s2 + $0x28] sm:$0xff]
    %v146 = vld [vmem:[%s2 + $0x30] sm:$0xff]
    %v147 = vld [vmem:[%s2 + $0x38] sm:$0xff]
    %v148 = vld [vmem:[%s2 + $0x40] sm:$0xff]
    %v149 = vld [vmem:[%s2 + $0x48] sm:$0xff]
    %v150 = vld [vmem:[%s2 + $0x50] sm:$0xff]
    %v151 = vld [vmem:[%s2 + $0x58] sm:$0xff]
    %v152 = vld [vmem:[%s2 + $0x60] sm:$0xff]
    %v153 = vld [vmem:[%s2 + $0x68] sm:$0xff]
    %v154 = vld [vmem:[%s2 + $0x70] sm:$0xff]
    %v155 = vld [vmem:[%s2 + $0x78] sm:$0xff]
    %v156 = vld [vmem:[%s2 + $0x80] sm:$0xff]
    %v157 = vld [vmem:[%s2 + $0x88] sm:$0xff]
    %v158 = vld [vmem:[%s2 + $0x90] sm:$0xff]
    %v159 = vld [vmem:[%s2 + $0x98] sm:$0xff]
    %v160 = vld [vmem:[%s2 + $0xa0] sm:$0xff]
    %v161 = vld [vmem:[%s2 + $0xa8] sm:$0xff]
    %v162 = vld [vmem:[%s2 + $0xb0] sm:$0xff]
    %v163 = vld [vmem:[%s2 + $0xb8] sm:$0xff]
    %v164 = vld [vmem:[%s2 + $0xc0] sm:$0xff]
    %v165 = vld [vmem:[%s2 + $0xc8] sm:$0xff]
    %v166 = vld [vmem:[%s2 + $0xd0] sm:$0xff]
    %v167 = vld [vmem:[%s2 + $0xd8] sm:$0xff]
    %v168 = vld [vmem:[%s2 + $0xe0] sm:$0xff]
    %v169 = vld [vmem:[%s2 + $0xe8] sm:$0xff]
    %v170 = vld [vmem:[%s2 + $0xf0] sm:$0xff]
    %v171 = vld [vmem:[%s2 + $0xf8] sm:$0xff]
    %v172 = vld [vmem:[%s3 + $0x1] sm:$0x1]
    %174 = vset.pattern.permute.xlu0 0
    %175 = vperm.xlu0 %174, %v172
    %v176 = vpop.permute.xlu0 %175
    %v179 = vunpack.c.l.s4 269488144
    %v180 = vunpack.c.0.s8 %v179
    %v181 = vlaneseq
    %v182 = vshrl.u32 %v181, 7
    %v183 = vsub.s32 %v180, %v182
    %v184 = vrot.slane %v176, %v183
    %185 = vmatprep.subr.mxu0 0.0
    %186 = vmatpush1.msra.mxu0 %v140
    %187 = vmatprep.subr.mxu0 0.0
    %188 = vmatpush1.msra.mxu0 %v141
    %189 = vmatprep.subr.mxu0 0.0
    %190 = vmatpush1.msra.mxu0 %v142
    %191 = vmatprep.subr.mxu0 0.0
    %192 = vmatpush1.msra.mxu0 %v143
    %193 = vmatprep.subr.mxu0 0.0
    %194 = vmatpush1.msra.mxu0 %v144
    %195 = vmatprep.subr.mxu0 0.0
    %196 = vmatpush1.msra.mxu0 %v145
    %197 = vmatprep.subr.mxu0 0.0
    %198 = vmatpush1.msra.mxu0 %v146
    %199 = vmatprep.subr.mxu0 0.0
    %200 = vmatpush1.msra.mxu0 %v147
    %201 = vmatprep.subr.mxu0 0.0
    %202 = vmatpush1.msra.mxu0 %v148
    %203 = vmatprep.subr.mxu0 0.0
    %204 = vmatpush1.msra.mxu0 %v149
    %205 = vmatprep.subr.mxu0 0.0
    %206 = vmatpush1.msra.mxu0 %v150
    %207 = vmatprep.subr.mxu0 0.0
    %208 = vmatpush1.msra.mxu0 %v151
    %209 = vmatprep.subr.mxu0 0.0
    %210 = vmatpush1.msra.mxu0 %v152
    %211 = vmatprep.subr.mxu0 0.0
    %212 = vmatpush1.msra.mxu0 %v153
    %213 = vmatprep.subr.mxu0 0.0
    %214 = vmatpush1.msra.mxu0 %v154
    %215 = vmatprep.subr.mxu0 0.0
    %216 = vmatpush1.msra.mxu0 %v155
    %217 = vmatprep.subr.mxu0 0.0
    %218 = vmatpush1.msra.mxu0 %v156
    %219 = vmatprep.subr.mxu0 0.0
    %220 = vmatpush1.msra.mxu0 %v157
    %221 = vmatprep.subr.mxu0 0.0
    %222 = vmatpush1.msra.mxu0 %v158
    %223 = vmatprep.subr.mxu0 0.0
    %224 = vmatpush1.msra.mxu0 %v159
    %225 = vmatprep.subr.mxu0 0.0
    %226 = vmatpush1.msra.mxu0 %v160
    %227 = vmatprep.subr.mxu0 0.0
    %228 = vmatpush1.msra.mxu0 %v161
    %229 = vmatprep.subr.mxu0 0.0
    %230 = vmatpush1.msra.mxu0 %v162
    %231 = vmatprep.subr.mxu0 0.0
    %232 = vmatpush1.msra.mxu0 %v163
    %233 = vmatprep.subr.mxu0 0.0
    %234 = vmatpush1.msra.mxu0 %v164
    %235 = vmatprep.subr.mxu0 0.0
    %236 = vmatpush1.msra.mxu0 %v165
    %237 = vmatprep.subr.mxu0 0.0
    %238 = vmatpush1.msra.mxu0 %v166
    %239 = vmatprep.subr.mxu0 0.0
    %240 = vmatpush1.msra.mxu0 %v167
    %241 = vmatprep.subr.mxu0 0.0
    %242 = vmatpush1.msra.mxu0 %v168
    %243 = vmatprep.subr.mxu0 0.0
    %244 = vmatpush1.msra.mxu0 %v169
    %245 = vmatprep.subr.mxu0 0.0
    %246 = vmatpush1.msra.mxu0 %v170
    %247 = vmatprep.subr.mxu0 0.0
    %248 = vmatpush1.msra.mxu0 %v171
    %249 = vmatprep.mubr.f32.mxu0 %v139
    %250 = vmatmul.mubr.f32.gmra.mrb[0].mxu0 %v138
    %v251 = vpop.f32.mrb[0].mxu0
    %v252 = vadd.f32 %v184, %v251
    %v253 = vpop.f32.mrb[0].mxu0
    %254 = vdwg.mxu0
    %vm255 = vcmask 57344
    %256 = vst.msk [vmem:[#allocation2] sm:$0x1] %vm255, %v252
    // Predicated region
    $region18: #{discriminator_law_aw.1} parent=1 // pred_check
      _
    $region19: #{discriminator_law_aw.1} parent=1 // pred_check_branch
      %258 = sbr.rel (0) target = $region21
    $region20: #{discriminator_law_aw.1} parent=1 // pred_region
      %s260 = ssub.s32 16, 16
      %261 = vsyncadd [#allocation3], %s260
      %s263 = sshll.u32 [#allocation2], 4
      %s264 = int_to_ptr.vmem [resolvable:$true] %s263
      %266 = dma.vmem_to_hbm [thread:$0]  %s264, 16, %s4, [#allocation3]
    $region21: #{discriminator_law_aw.1} parent=1 // pred_fallthru
      _
    // Predicated region
    $region22: #{discriminator_law_aw.1} parent=1 // pred_check
      _
    $region23: #{discriminator_law_aw.1} parent=1 // pred_check_branch
      %268 = sbr.rel (0) target = $region25
    $region24: #{discriminator_law_aw.1} parent=1 // pred_region
      %269 = dma.done [#allocation3], 16
    $region25: #{discriminator_law_aw.1} parent=1 // pred_fallthru
      _
    %270 = vsyncpa [#allocation3], 1

</llo_original>
